<compile_context>
chip_gen: v7x
topology: tpu7x:2x2x1
jax: 0.10.0
libtpu: 0.0.40
codegen_flags: <defaults>
</compile_context>

<pallas_src>
import jax
import jax.numpy as jnp
from jax.experimental import pallas as pl
from jax.experimental.pallas import tpu as pltpu


def _h_swish_kernel(x_ref, o_ref):
    x = x_ref[...]
    # h_sigmoid(x) = relu6(x + 3) / 6 ;  h_swish(x) = x * h_sigmoid(x)
    # Weak-typed constants keep bf16 inputs in bf16 arithmetic.
    hs = jnp.clip(x + 3.0, 0.0, 6.0) * (1.0 / 6.0)
    o_ref[...] = (x * hs).astype(o_ref.dtype)


def _h_swish_jnp(x):
    """Plain-jnp h_swish (used only for a <128-element unaligned tail)."""
    return x * (jnp.clip(x + 3.0, 0.0, 6.0) * (1.0 / 6.0))


def _block_cfg():
    """(target_block_bytes, vmem_limit_bytes) per TPU generation."""
    vmem_cap = 128 * 1024 * 1024
    try:
        vmem_cap = int(pltpu.get_tpu_info().vmem_capacity_bytes)
    except Exception:
        pass
    if vmem_cap <= 64 * 1024 * 1024:
        # v7x-class: ~3.2 TB/s HBM makes the ~0.35us/step overhead significant
        # at small blocks; 8 MiB blocks -> 2x8 in + 2x8 out = 32 MiB buffers,
        # well inside 64 MiB physical VMEM with an explicit 44 MiB scoped limit.
        return 8 * 1024 * 1024, 44 * 1024 * 1024
    # v5e / v6e (128 MiB VMEM): 4 MiB blocks are past the measured elementwise
    # roofline knee; 16 MiB of double buffers, scoped limit raised to 40 MiB.
    return 4 * 1024 * 1024, 40 * 1024 * 1024


def _pick_row_tile(rows, lanes, itemsize, sub_mult, block_bytes):
    rows_ceil = pl.cdiv(rows, sub_mult) * sub_mult
    target = max(sub_mult, (block_bytes // (lanes * itemsize)) // sub_mult * sub_mult)
    # Keep >= ~4 grid steps on mid-sized tensors so both v7x TensorCores get
    # work and the auto double-buffered pipeline has >=2 steps per core.
    quarter = (rows_ceil // 4) // sub_mult * sub_mult
    if quarter >= sub_mult:
        target = min(target, quarter)
    row_tile = min(target, rows_ceil)
    if row_tile > rows:
        # Single block covering the whole (short) array: block dim == array dim
        # is always legal and avoids masking entirely.
        row_tile = rows
    return row_tile


def _h_swish_2d(x2d, row_tile, vmem_limit_bytes, donate):
    rows, lanes = x2d.shape
    grid = (pl.cdiv(rows, row_tile),)  # ragged last block is masked by Pallas
    return pl.pallas_call(
        _h_swish_kernel,
        out_shape=jax.ShapeDtypeStruct((rows, lanes), x2d.dtype),
        grid=grid,
        in_specs=[pl.BlockSpec((row_tile, lanes), lambda i: (i, 0))],
        out_specs=pl.BlockSpec((row_tile, lanes), lambda i: (i, 0)),
        input_output_aliases={0: 0} if donate else {},
        compiler_params=pltpu.CompilerParams(
            dimension_semantics=("parallel",),
            vmem_limit_bytes=vmem_limit_bytes,
        ),
    )(x2d)


def h_swish(x, *, inplace=False):
    """Elementwise h_swish on an arbitrary-shape array (e.g. NCHW).

    inplace=True adds input_output_aliases={0: 0}; only useful when the caller
    donates x (e.g. under jit with donate_argnums), otherwise XLA inserts a
    defensive copy.
    """
    orig_shape = x.shape
    dtype = x.dtype
    n = x.size
    if n == 0:
        return x

    itemsize = jnp.dtype(dtype).itemsize
    # Sublane packing: 32-bit tiles are (8,128); 16-bit pack 2/sublane -> 16;
    # 8-bit -> 32. Row tiles stay multiples of this to avoid relayouts.
    sub_mult = max(8, 32 // itemsize)
    block_bytes, vmem_limit = _block_cfg()

    # Lane width: largest of 512/256/128 dividing the flat size -> the 2D
    # reshape is free and the kernel is exactly one HBM read + one HBM write.
    lanes = None
    for cand in (512, 256, 128):
        if n % cand == 0:
            lanes = cand
            break

    if lanes is None:
        # Rare: no 128-multiple divides the flat size. Run the kernel over the
        # lane-aligned bulk and finish the (<128-element) tail with plain jnp
        # instead of padding/slicing the whole array (two extra HBM passes).
        lanes = 128
        n_bulk = (n // lanes) * lanes
        x_flat = jnp.reshape(x, (-1,))
        tail = _h_swish_jnp(x_flat[n_bulk:])
        if n_bulk == 0:
            return jnp.reshape(tail, orig_shape)
        rows = n_bulk // lanes
        x2d = jnp.reshape(x_flat[:n_bulk], (rows, lanes))
        row_tile = _pick_row_tile(rows, lanes, itemsize, sub_mult, block_bytes)
        bulk = _h_swish_2d(x2d, row_tile, vmem_limit, inplace)
        out_flat = jnp.concatenate([jnp.reshape(bulk, (-1,)), tail])
        return jnp.reshape(out_flat, orig_shape)

    rows = n // lanes
    x2d = jnp.reshape(x, (rows, lanes))
    row_tile = _pick_row_tile(rows, lanes, itemsize, sub_mult, block_bytes)
    out2d = _h_swish_2d(x2d, row_tile, vmem_limit, inplace)
    return jnp.reshape(out2d, orig_shape)


def h_swish_ref(x):
    return x * (jnp.clip(x + 3.0, 0.0, 6.0) / 6.0)


if __name__ == "__main__":
    key = jax.random.PRNGKey(0)

    # NCHW, matching PyTorch conv-style layout.
    x = jax.random.normal(key, (2, 4, 16, 16), dtype=jnp.float32) * 4.0
    out = jax.block_until_ready(h_swish(x))
    ref = h_swish_ref(x)
    assert out.shape == x.shape and out.dtype == x.dtype
    assert jnp.max(jnp.abs(out - ref)) < 1e-5

    # Non-lane-aligned flat size: exercises the bulk + jnp-tail path.
    x2 = jax.random.normal(jax.random.PRNGKey(1), (3, 5, 7, 11), dtype=jnp.float32) * 4.0
    out2 = jax.block_until_ready(h_swish(x2))
    ref2 = h_swish_ref(x2)
    assert out2.shape == x2.shape and out2.dtype == x2.dtype
    assert jnp.max(jnp.abs(out2 - ref2)) < 1e-5

    # Multi-step grid with a ragged (masked) last row-block.
    x3 = jax.random.normal(jax.random.PRNGKey(2), (2, 4, 100, 128), dtype=jnp.float32) * 4.0
    out3 = jax.block_until_ready(h_swish(x3))
    ref3 = h_swish_ref(x3)
    assert out3.shape == x3.shape and out3.dtype == x3.dtype
    assert jnp.max(jnp.abs(out3 - ref3)) < 1e-5

    print("KERNEL_OK")
</pallas_src>

<mosaic_0001>
module attributes {stable_mosaic.version = 11 : i64} {
  func.func @_h_swish_kernel(%arg0: i32, %arg1: memref<4x512xf32, #tpu.memory_space<vmem>>, %arg2: memref<4x512xf32, #tpu.memory_space<vmem>>) attributes {dimension_semantics = [#tpu.dimension_semantics<parallel>], iteration_bounds = array<i64: 1>, scalar_prefetch = 0 : i64, scratch_operands = 0 : i64, tpu.core_type = #tpu.core_type<tc>, window_params = [{transform_indices = @transform_0, window_bounds = array<i64: 4, 512>}, {transform_indices = @transform_1, window_bounds = array<i64: 4, 512>}]} {
    %c0 = arith.constant 0 : index
    %c0_0 = arith.constant 0 : index
    %0 = vector.load %arg1[%c0, %c0_0] : memref<4x512xf32, #tpu.memory_space<vmem>>, vector<4x512xf32>
    %cst = arith.constant 3.000000e+00 : f32
    %1 = vector.broadcast %cst : f32 to vector<4x512xf32>
    %2 = arith.addf %0, %1 : vector<4x512xf32>
    %cst_1 = arith.constant 0.000000e+00 : f32
    %cst_2 = arith.constant 6.000000e+00 : f32
    %3 = vector.broadcast %cst_1 : f32 to vector<4x512xf32>
    %4 = arith.maximumf %3, %2 : vector<4x512xf32>
    %5 = vector.broadcast %cst_2 : f32 to vector<4x512xf32>
    %6 = arith.minimumf %5, %4 : vector<4x512xf32>
    %cst_3 = arith.constant 0.166666672 : f32
    %7 = vector.broadcast %cst_3 : f32 to vector<4x512xf32>
    %8 = arith.mulf %6, %7 : vector<4x512xf32>
    %9 = arith.mulf %0, %8 : vector<4x512xf32>
    %c0_4 = arith.constant 0 : index
    %c0_5 = arith.constant 0 : index
    %10 = vector.load %arg2[%c0_4, %c0_5] : memref<4x512xf32, #tpu.memory_space<vmem>>, vector<4x512xf32>
    tpu.vector_store %arg2[%c0_4, %c0_5], %9 {strides = array<i32>} : memref<4x512xf32, #tpu.memory_space<vmem>>, vector<4x512xf32>,
    return
  }
  func.func @transform_0(%arg0: i32) -> (i32, i32) {
    %c0_i32 = arith.constant 0 : i32
    %c0_i32_0 = arith.constant 0 : i32
    return %arg0, %c0_i32 : i32, i32
  }
  func.func @transform_1(%arg0: i32) -> (i32, i32) {
    %c0_i32 = arith.constant 0 : i32
    %c0_i32_0 = arith.constant 0 : i32
    return %arg0, %c0_i32 : i32, i32
  }
}

</mosaic_0001>

<llo_original>
// kernel: tpu_custom_call.1
$region0: #{tpu_custom_call.1}
  #allocation0 [shape = 'u32[]', space=smem, size = 0x4, offset = 0x4, fixed_abs, tag = 'smem constant byte address 0x4 - core index']
  #allocation1 [shape = 'u32[144,128]{1,0:T(1,128)}', space=vmem, size = 0x12000, scoped, tag = 'internal scratch']
  %s0 = inlined_call_operand.hbm [shape: f32[4,512], index: 0, kind: input, shape index: {}]
  %s1 = inlined_call_operand.hbm [shape: f32[4,512], index: 1, kind: output, shape index: {}]
  %s2 = sld [smem:[#allocation0]]
  $region18: #{tpu_custom_call.1} parent=0
    _
  %s4 = ssub.s32 1, %s2
  %s5 = scalar_select 0, %s4, %s2
  $region1: #{tpu_custom_call.1} parent=0
    #allocation2 [shape = 'u8[8192]{0}', space=vmem, size = 0x2000, scoped, tag = 'input window, operand 0, single buffered']
    #allocation3 [shape = 's32[1]{0}', space=sflag, size = 0x4, scoped, tag = 'scoped memory for tpu_custom_call.1']
    #allocation4 [shape = 's32[1]{0}', space=sflag, size = 0x4, scoped, tag = 'scoped memory for tpu_custom_call.1']
    #allocation5 [shape = 'u8[8192]{0}', space=vmem, size = 0x2000, scoped, tag = 'output window, operand 0, single buffered']
    %6 = vsyncpa [#allocation3], 0
    %7 = vsyncpa [#allocation4], 0
    // Predicated region
    $region2: #{tpu_custom_call.1} parent=1 // pred_check
      _
    $region3: #{tpu_custom_call.1} parent=1 // pred_check_branch
      %9 = sbr.rel (0) target = $region5
    $region4: #{tpu_custom_call.1} parent=1 // pred_region
      %s11 = ssub.s32 256, 256
      %12 = vsyncadd [#allocation3], %s11
      %s14 = sshll.u32 [#allocation2], 4
      %s15 = int_to_ptr.vmem [resolvable:$true] %s14
      %17 = dma.hbm_to_vmem [thread:$0]  %s0, 256, %s15, [#allocation3]
    $region5: #{tpu_custom_call.1} parent=1 // pred_fallthru
      _
    // Predicated region
    $region6: #{tpu_custom_call.1} parent=1 // pred_check
      _
    $region7: #{tpu_custom_call.1} parent=1 // pred_check_branch
      %19 = sbr.rel (0) target = $region9
    $region8: #{tpu_custom_call.1} parent=1 // pred_region
      %20 = dma.done [#allocation3], 256
    $region9: #{tpu_custom_call.1} parent=1 // pred_fallthru
      _
    %v21 = vld [vmem:[#allocation2] sm:$0xff]
    %v22 = vld [vmem:[#allocation2 + $0x8] sm:$0xff]
    %v23 = vadd.f32 %v21, 3.0
    %v24 = vadd.f32 %v22, 3.0
    %v25 = vmax.f32 %v23, 0.0
    %v26 = vmax.f32 %v24, 0.0
    %v27 = vmin.f32 %v25, 6.0
    %v28 = vmin.f32 %v26, 6.0
    %v29 = vmul.f32 %v27, 0.16666667
    %v30 = vmul.f32 %v28, 0.16666667
    %v31 = vmul.f32 %v21, %v29
    %v32 = vmul.f32 %v22, %v30
    %33 = vst [vmem:[#allocation5] sm:$0xff] %v31
    %34 = vst [vmem:[#allocation5 + $0x8] sm:$0xff] %v32
    // Predicated region
    $region10: #{tpu_custom_call.1} parent=1 // pred_check
      _
    $region11: #{tpu_custom_call.1} parent=1 // pred_check_branch
      %36 = sbr.rel (0) target = $region13
    $region12: #{tpu_custom_call.1} parent=1 // pred_region
      %s38 = ssub.s32 256, 256
      %39 = vsyncadd [#allocation4], %s38
      %s41 = sshll.u32 [#allocation5], 4
      %s42 = int_to_ptr.vmem [resolvable:$true] %s41
      %44 = dma.vmem_to_hbm [thread:$0]  %s42, 256, %s1, [#allocation4]
    $region13: #{tpu_custom_call.1} parent=1 // pred_fallthru
      _
    // Predicated region
    $region14: #{tpu_custom_call.1} parent=1 // pred_check
      _
    $region15: #{tpu_custom_call.1} parent=1 // pred_check_branch
      %46 = sbr.rel (0) target = $region17
    $region16: #{tpu_custom_call.1} parent=1 // pred_region
      %47 = dma.done [#allocation4], 256
    $region17: #{tpu_custom_call.1} parent=1 // pred_fallthru
      _
    %48 = vsyncpa [#allocation3], 1
    %49 = vsyncpa [#allocation4], 1

</llo_original>
